<compile_context>
chip_gen: v7x
topology: tpu7x:2x2x1
jax: 0.10.0
libtpu: 0.0.40
codegen_flags: <defaults>
</compile_context>

<pallas_src>
import jax
import jax.numpy as jnp
from jax.experimental import pallas as pl
from jax.experimental.pallas import tpu as pltpu


def _x_update_kernel(rho_ref,          # SMEM (2,)   : [rho1, rho2]
                     x0_ref, x1_ref,   # VMEM (TM, HW)
                     at_ref,           # VMEM (HW, HW): A^T (real operator)
                     out_ref):         # VMEM (TM, HW)
    rho1 = rho_ref[0]
    rho2 = rho_ref[1]
    # Fused spatial-domain combination (saves an HBM roundtrip vs. pre-scaling
    # in the wrapper) followed by one lane-dense MXU matmul.
    y = rho1 * x0_ref[...] + rho2 * x1_ref[...]                  # (TM, HW) f32
    out_ref[...] = jnp.dot(y, at_ref[...],
                           preferred_element_type=jnp.float32)   # (TM, HW)


def _build_operator_t(hth_fft, rho1, rho2):
    """A^T of the real linear map  y -> ifft2(fft2(y) / (rho1*HtH + rho2)).real,
    acting on row-major-flattened (H*W,) vectors.

    Built by applying the exact FFT-based operator to the identity basis, so no
    low-precision matmul enters the operator construction.
    """
    H, W = hth_fft.shape
    hw = H * W
    inv_lhs = 1.0 / (rho1 * hth_fft + rho2)                      # (H, W) real
    basis = jnp.eye(hw, dtype=jnp.float32).reshape(hw, H, W)
    cols = jnp.fft.ifft2(
        jnp.fft.fft2(basis, axes=(1, 2)) * inv_lhs[None],
        axes=(1, 2)).real                                        # (hw, H, W)
    # Row k of cols.reshape(hw, hw) is A @ e_k, i.e. column k of A  =>  A^T.
    return cols.reshape(hw, hw).astype(jnp.float32)


def x_update(x0, x1, hth_fft, rho1, rho2):
    """Pallas implementation of X_Update.forward.

    x0, x1   : (N, C, H, W) float32
    hth_fft  : (H, W) float32 (real PSD of blur operator, broadcast over N, C)
    rho1/2   : scalars
    returns  : (N, C, H, W) float32
    """
    N, C, H, W = x0.shape
    hw = H * W
    M = N * C
    x0f = x0.reshape(M, hw)
    x1f = x1.reshape(M, hw)

    at = _build_operator_t(hth_fft, rho1, rho2)                  # (hw, hw) f32
    rho = jnp.array([rho1, rho2], dtype=jnp.float32)

    # Tile the flattened batch axis.  Prefer large tiles (amortize per-step
    # pipeline overhead), but keep >=2 grid steps when M allows it so the
    # "parallel" axis can shard across v7x's two TensorCores.  Block's
    # second-to-last dim is a multiple of 8 (or the full axis); last dim is
    # the full hw (a multiple of 128 when hw >= 128), satisfying (8, 128).
    if M >= 512:
        tm = 256
    elif M >= 16 and M % 16 == 0:
        tm = M // 2
    else:
        tm = M
    n_steps = pl.cdiv(M, tm)

    per_m = pl.BlockSpec((tm, hw), lambda m, rho_ref: (m, 0))
    op_spec = pl.BlockSpec((hw, hw), lambda m, rho_ref: (0, 0))

    out = pl.pallas_call(
        _x_update_kernel,
        out_shape=jax.ShapeDtypeStruct((M, hw), jnp.float32),
        grid_spec=pltpu.PrefetchScalarGridSpec(
            num_scalar_prefetch=1,
            grid=(n_steps,),
            in_specs=[
                per_m,        # x0
                per_m,        # x1
                op_spec,      # A^T (constant across grid)
            ],
            out_specs=per_m,
        ),
        compiler_params=pltpu.CompilerParams(
            dimension_semantics=("parallel",)),
    )(rho, x0f, x1f, at)

    return out.reshape(N, C, H, W)


def _reference(x0, x1, hth_fft, rho1, rho2):
    lhs = rho1 * hth_fft + rho2                      # (H, W) -> broadcast
    rhs = jnp.fft.fftn(rho1 * x0 + rho2 * x1, axes=(2, 3))
    x = jnp.fft.ifftn(rhs / lhs, axes=(2, 3))
    return x.real


if __name__ == "__main__":
    N, C, H, W = 2, 4, 16, 16
    key = jax.random.PRNGKey(0)
    k0, k1, _ = jax.random.split(key, 3)

    x0 = jax.random.normal(k0, (N, C, H, W), dtype=jnp.float32)
    x1 = jax.random.normal(k1, (N, C, H, W), dtype=jnp.float32)

    # Synthetic real HtH_fft = |FFT(psf)|^2 for a deterministic small PSF.
    psf = jnp.zeros((H, W), dtype=jnp.float32)
    psf = psf.at[:3, :3].set(jnp.asarray(
        [[1., 2., 1.], [2., 4., 2.], [1., 2., 1.]], dtype=jnp.float32) / 16.0)
    hth_fft = (jnp.abs(jnp.fft.fftn(psf)) ** 2).astype(jnp.float32)

    rho1, rho2 = 0.5, 1.5

    out = x_update(x0, x1, hth_fft, rho1, rho2)
    out = jax.block_until_ready(out)

    ref = _reference(x0, x1, hth_fft, rho1, rho2)
    assert out.shape == (N, C, H, W)
    assert jnp.allclose(out, ref, atol=1e-3, rtol=1e-3), \
        f"max err {jnp.max(jnp.abs(out - ref))}"

    print("KERNEL_OK")
</pallas_src>

<mosaic_0001>
module attributes {stable_mosaic.version = 11 : i64} {
  func.func @_x_update_kernel(%arg0: i32, %arg1: memref<2xf32, #tpu.memory_space<smem>>, %arg2: memref<8x256xf32, #tpu.memory_space<vmem>>, %arg3: memref<8x256xf32, #tpu.memory_space<vmem>>, %arg4: memref<256x256xf32, #tpu.memory_space<vmem>>, %arg5: memref<8x256xf32, #tpu.memory_space<vmem>>) attributes {dimension_semantics = [#tpu.dimension_semantics<parallel>], iteration_bounds = array<i64: 1>, scalar_prefetch = 1 : i64, scratch_operands = 0 : i64, tpu.core_type = #tpu.core_type<tc>, window_params = [{transform_indices = @transform_0, window_bounds = array<i64: 8, 256>}, {transform_indices = @transform_1, window_bounds = array<i64: 8, 256>}, {pipeline_mode = #tpu.pipeline_mode<synchronous>, transform_indices = @transform_2, window_bounds = array<i64: 256, 256>}, {transform_indices = @transform_3, window_bounds = array<i64: 8, 256>}]} {
    %c0 = arith.constant 0 : index
    %0 = memref.load %arg1[%c0] : memref<2xf32, #tpu.memory_space<smem>>
    %c1 = arith.constant 1 : index
    %1 = memref.load %arg1[%c1] : memref<2xf32, #tpu.memory_space<smem>>
    %c0_0 = arith.constant 0 : index
    %c0_1 = arith.constant 0 : index
    %2 = vector.load %arg2[%c0_0, %c0_1] : memref<8x256xf32, #tpu.memory_space<vmem>>, vector<8x256xf32>
    %3 = vector.broadcast %0 : f32 to vector<8x256xf32>
    %4 = arith.mulf %3, %2 : vector<8x256xf32>
    %c0_2 = arith.constant 0 : index
    %c0_3 = arith.constant 0 : index
    %5 = vector.load %arg3[%c0_2, %c0_3] : memref<8x256xf32, #tpu.memory_space<vmem>>, vector<8x256xf32>
    %6 = vector.broadcast %1 : f32 to vector<8x256xf32>
    %7 = arith.mulf %6, %5 : vector<8x256xf32>
    %8 = arith.addf %4, %7 : vector<8x256xf32>
    %c0_4 = arith.constant 0 : index
    %c0_5 = arith.constant 0 : index
    %9 = vector.load %arg4[%c0_4, %c0_5] : memref<256x256xf32, #tpu.memory_space<vmem>>, vector<256x256xf32>
    %cst = arith.constant dense<0.000000e+00> : vector<8x256xf32>
    %10 = tpu.matmul %8, %9, %cst {dimension_numbers = #tpu.dot_dimension_numbers<[1], [0], [0], [1], [0, 0, 1, 1], [], []>} : vector<8x256xf32>, vector<256x256xf32>, vector<8x256xf32> -> vector<8x256xf32>
    %c0_6 = arith.constant 0 : index
    %c0_7 = arith.constant 0 : index
    %11 = vector.load %arg5[%c0_6, %c0_7] : memref<8x256xf32, #tpu.memory_space<vmem>>, vector<8x256xf32>
    tpu.vector_store %arg5[%c0_6, %c0_7], %10 {strides = array<i32>} : memref<8x256xf32, #tpu.memory_space<vmem>>, vector<8x256xf32>,
    return
  }
  func.func @transform_0(%arg0: i32, %arg1: memref<2xf32, #tpu.memory_space<smem>>) -> (i32, i32) {
    %c0_i32 = arith.constant 0 : i32
    %c0_i32_0 = arith.constant 0 : i32
    return %arg0, %c0_i32 : i32, i32
  }
  func.func @transform_1(%arg0: i32, %arg1: memref<2xf32, #tpu.memory_space<smem>>) -> (i32, i32) {
    %c0_i32 = arith.constant 0 : i32
    %c0_i32_0 = arith.constant 0 : i32
    return %arg0, %c0_i32 : i32, i32
  }
  func.func @transform_2(%arg0: i32, %arg1: memref<2xf32, #tpu.memory_space<smem>>) -> (i32, i32) {
    %c0_i32 = arith.constant 0 : i32
    %c0_i32_0 = arith.constant 0 : i32
    %c0_i32_1 = arith.constant 0 : i32
    return %c0_i32, %c0_i32_0 : i32, i32
  }
  func.func @transform_3(%arg0: i32, %arg1: memref<2xf32, #tpu.memory_space<smem>>) -> (i32, i32) {
    %c0_i32 = arith.constant 0 : i32
    %c0_i32_0 = arith.constant 0 : i32
    return %arg0, %c0_i32 : i32, i32
  }
}

</mosaic_0001>

<llo_original>
// kernel: tpu_custom_call.1
$region0: #{tpu_custom_call.1}
  #allocation0 [shape = 'u32[]', space=smem, size = 0x4, offset = 0x4, fixed_abs, tag = 'smem constant byte address 0x4 - core index']
  #allocation1 [shape = 'u32[144,128]{1,0:T(1,128)}', space=vmem, size = 0x12000, scoped, tag = 'internal scratch']
  #allocation2 [shape = 's32[1]{0}', space=sflag, size = 0x4, scoped, tag = 'scoped memory for tpu_custom_call.1']
  #allocation3 [shape = 'u8[512]{0}', space=smem, size = 0x200, scoped, tag = 'prefetched SMEM operand 0']
  %s0 = inlined_call_operand.hbm [shape: f32[2], index: 0, kind: input, shape index: {}]
  %s1 = inlined_call_operand.hbm [shape: f32[8,256], index: 1, kind: input, shape index: {}]
  %s2 = inlined_call_operand.hbm [shape: f32[8,256], index: 2, kind: input, shape index: {}]
  %s3 = inlined_call_operand.hbm [shape: f32[256,256], index: 3, kind: input, shape index: {}]
  %s4 = inlined_call_operand.hbm [shape: f32[8,256], index: 4, kind: output, shape index: {}]
  %s5 = sld [smem:[#allocation0]]
  $region34: #{tpu_custom_call.1} parent=0
    _
  %s7 = ssub.s32 1, %s5
  %s8 = scalar_select 0, %s7, %s5
  %10 = dma.hbm_to_smem %s0, 16, [#allocation3], [#allocation2]
  %11 = dma.done [#allocation2], 16
  %12 = sfence
  $region1: #{tpu_custom_call.1} parent=0
    #allocation4 [shape = 'u8[8192]{0}', space=vmem, size = 0x2000, scoped, tag = 'input window, operand 1, single buffered']
    #allocation5 [shape = 's32[1]{0}', space=sflag, size = 0x4, scoped, tag = 'scoped memory for tpu_custom_call.1']
    #allocation6 [shape = 's32[1]{0}', space=sflag, size = 0x4, scoped, tag = 'scoped memory for tpu_custom_call.1']
    #allocation7 [shape = 'u8[8192]{0}', space=vmem, size = 0x2000, scoped, tag = 'input window, operand 2, single buffered']
    #allocation8 [shape = 's32[1]{0}', space=sflag, size = 0x4, scoped, tag = 'scoped memory for tpu_custom_call.1']
    #allocation9 [shape = 'u8[262144]{0}', space=vmem, size = 0x40000, scoped, tag = 'input window, operand 3, single buffered']
    #allocation10 [shape = 'u8[8192]{0}', space=vmem, size = 0x2000, scoped, tag = 'output window, operand 0, single buffered']
    %13 = vsyncpa [#allocation5], 0
    %14 = vsyncpa [#allocation8], 0
    %15 = vsyncpa [#allocation6], 0
    // Predicated region
    $region2: #{tpu_custom_call.1} parent=1 // pred_check
      _
    $region3: #{tpu_custom_call.1} parent=1 // pred_check_branch
      %17 = sbr.rel (0) target = $region5
    $region4: #{tpu_custom_call.1} parent=1 // pred_region
      %s19 = ssub.s32 256, 256
      %20 = vsyncadd [#allocation5], %s19
      %s22 = sshll.u32 [#allocation4], 4
      %s23 = int_to_ptr.vmem [resolvable:$true] %s22
      %25 = dma.hbm_to_vmem [thread:$0]  %s1, 256, %s23, [#allocation5]
    $region5: #{tpu_custom_call.1} parent=1 // pred_fallthru
      _
    // Predicated region
    $region6: #{tpu_custom_call.1} parent=1 // pred_check
      _
    $region7: #{tpu_custom_call.1} parent=1 // pred_check_branch
      %27 = sbr.rel (0) target = $region9
    $region8: #{tpu_custom_call.1} parent=1 // pred_region
      %s29 = ssub.s32 256, 256
      %30 = vsyncadd [#allocation8], %s29
      %s32 = sshll.u32 [#allocation7], 4
      %s33 = int_to_ptr.vmem [resolvable:$true] %s32
      %35 = dma.hbm_to_vmem [thread:$0]  %s2, 256, %s33, [#allocation8]
    $region9: #{tpu_custom_call.1} parent=1 // pred_fallthru
      _
    // Predicated region
    $region10: #{tpu_custom_call.1} parent=1 // pred_check
      _
    $region11: #{tpu_custom_call.1} parent=1 // pred_check_branch
      %37 = sbr.rel (0) target = $region13
    $region12: #{tpu_custom_call.1} parent=1 // pred_region
      %s39 = ssub.s32 8192, 8192
      %40 = vsyncadd [#allocation8], %s39
      %s41 = sshll.u32 [#allocation9], 4
      %s42 = int_to_ptr.vmem [resolvable:$true] %s41
      %47 = dma.hbm_to_vmem [thread:$0]  %s3, 8192, %s42, [#allocation8], 256, 256, 16
    $region13: #{tpu_custom_call.1} parent=1 // pred_fallthru
      _
    // Predicated region
    $region14: #{tpu_custom_call.1} parent=1 // pred_check
      _
    $region15: #{tpu_custom_call.1} parent=1 // pred_check_branch
      %49 = sbr.rel (0) target = $region17
    $region16: #{tpu_custom_call.1} parent=1 // pred_region
      %50 = dma.done [#allocation5], 256
    $region17: #{tpu_custom_call.1} parent=1 // pred_fallthru
      _
    // Predicated region
    $region18: #{tpu_custom_call.1} parent=1 // pred_check
      _
    $region19: #{tpu_custom_call.1} parent=1 // pred_check_branch
      %52 = sbr.rel (0) target = $region21
    $region20: #{tpu_custom_call.1} parent=1 // pred_region
      %53 = dma.done [#allocation8], 256
    $region21: #{tpu_custom_call.1} parent=1 // pred_fallthru
      _
    // Predicated region
    $region22: #{tpu_custom_call.1} parent=1 // pred_check
      _
    $region23: #{tpu_custom_call.1} parent=1 // pred_check_branch
      %55 = sbr.rel (0) target = $region25
    $region24: #{tpu_custom_call.1} parent=1 // pred_region
      %56 = dma.done [#allocation8], 8192
    $region25: #{tpu_custom_call.1} parent=1 // pred_fallthru
      _
    %s57 = sld [smem:[#allocation3]]
    %s58 = sld [smem:[#allocation3 + $0x1]]
    %v59 = vld [vmem:[#allocation4] sm:$0xff]
    %v60 = vld [vmem:[#allocation4 + $0x8] sm:$0xff]
    %v61 = vstv %s57
    %v62 = vmul.f32 %v61, %v59
    %v63 = vmul.f32 %v61, %v60
    %v64 = vld [vmem:[#allocation7] sm:$0xff]
    %v65 = vld [vmem:[#allocation7 + $0x8] sm:$0xff]
    %v66 = vstv %s58
    %v67 = vmul.f32 %v66, %v64
    %v68 = vmul.f32 %v66, %v65
    %v69 = vadd.f32 %v62, %v67
    %v70 = vadd.f32 %v63, %v68
    %v71 = vld [vmem:[#allocation9] sm:$0xff]
    %v72 = vld [vmem:[#allocation9 + $0x8] sm:$0xff]
    %v73 = vld [vmem:[#allocation9 + $0x10] sm:$0xff]
    %v74 = vld [vmem:[#allocation9 + $0x18] sm:$0xff]
    %v75 = vld [vmem:[#allocation9 + $0x20] sm:$0xff]
    %v76 = vld [vmem:[#allocation9 + $0x28] sm:$0xff]
    %v77 = vld [vmem:[#allocation9 + $0x30] sm:$0xff]
    %v78 = vld [vmem:[#allocation9 + $0x38] sm:$0xff]
    %v79 = vld [vmem:[#allocation9 + $0x40] sm:$0xff]
    %v80 = vld [vmem:[#allocation9 + $0x48] sm:$0xff]
    %v81 = vld [vmem:[#allocation9 + $0x50] sm:$0xff]
    %v82 = vld [vmem:[#allocation9 + $0x58] sm:$0xff]
    %v83 = vld [vmem:[#allocation9 + $0x60] sm:$0xff]
    %v84 = vld [vmem:[#allocation9 + $0x68] sm:$0xff]
    %v85 = vld [vmem:[#allocation9 + $0x70] sm:$0xff]
    %v86 = vld [vmem:[#allocation9 + $0x78] sm:$0xff]
    %v87 = vld [vmem:[#allocation9 + $0x80] sm:$0xff]
    %v88 = vld [vmem:[#allocation9 + $0x88] sm:$0xff]
    %v89 = vld [vmem:[#allocation9 + $0x90] sm:$0xff]
    %v90 = vld [vmem:[#allocation9 + $0x98] sm:$0xff]
    %v91 = vld [vmem:[#allocation9 + $0xa0] sm:$0xff]
    %v92 = vld [vmem:[#allocation9 + $0xa8] sm:$0xff]
    %v93 = vld [vmem:[#allocation9 + $0xb0] sm:$0xff]
    %v94 = vld [vmem:[#allocation9 + $0xb8] sm:$0xff]
    %v95 = vld [vmem:[#allocation9 + $0xc0] sm:$0xff]
    %v96 = vld [vmem:[#allocation9 + $0xc8] sm:$0xff]
    %v97 = vld [vmem:[#allocation9 + $0xd0] sm:$0xff]
    %v98 = vld [vmem:[#allocation9 + $0xd8] sm:$0xff]
    %v99 = vld [vmem:[#allocation9 + $0xe0] sm:$0xff]
    %v100 = vld [vmem:[#allocation9 + $0xe8] sm:$0xff]
    %v101 = vld [vmem:[#allocation9 + $0xf0] sm:$0xff]
    %v102 = vld [vmem:[#allocation9 + $0xf8] sm:$0xff]
    %v103 = vld [vmem:[#allocation9 + $0x100] sm:$0xff]
    %v104 = vld [vmem:[#allocation9 + $0x108] sm:$0xff]
    %v105 = vld [vmem:[#allocation9 + $0x110] sm:$0xff]
    %v106 = vld [vmem:[#allocation9 + $0x118] sm:$0xff]
    %v107 = vld [vmem:[#allocation9 + $0x120] sm:$0xff]
    %v108 = vld [vmem:[#allocation9 + $0x128] sm:$0xff]
    %v109 = vld [vmem:[#allocation9 + $0x130] sm:$0xff]
    %v110 = vld [vmem:[#allocation9 + $0x138] sm:$0xff]
    %v111 = vld [vmem:[#allocation9 + $0x140] sm:$0xff]
    %v112 = vld [vmem:[#allocation9 + $0x148] sm:$0xff]
    %v113 = vld [vmem:[#allocation9 + $0x150] sm:$0xff]
    %v114 = vld [vmem:[#allocation9 + $0x158] sm:$0xff]
    %v115 = vld [vmem:[#allocation9 + $0x160] sm:$0xff]
    %v116 = vld [vmem:[#allocation9 + $0x168] sm:$0xff]
    %v117 = vld [vmem:[#allocation9 + $0x170] sm:$0xff]
    %v118 = vld [vmem:[#allocation9 + $0x178] sm:$0xff]
    %v119 = vld [vmem:[#allocation9 + $0x180] sm:$0xff]
    %v120 = vld [vmem:[#allocation9 + $0x188] sm:$0xff]
    %v121 = vld [vmem:[#allocation9 + $0x190] sm:$0xff]
    %v122 = vld [vmem:[#allocation9 + $0x198] sm:$0xff]
    %v123 = vld [vmem:[#allocation9 + $0x1a0] sm:$0xff]
    %v124 = vld [vmem:[#allocation9 + $0x1a8] sm:$0xff]
    %v125 = vld [vmem:[#allocation9 + $0x1b0] sm:$0xff]
    %v126 = vld [vmem:[#allocation9 + $0x1b8] sm:$0xff]
    %v127 = vld [vmem:[#allocation9 + $0x1c0] sm:$0xff]
    %v128 = vld [vmem:[#allocation9 + $0x1c8] sm:$0xff]
    %v129 = vld [vmem:[#allocation9 + $0x1d0] sm:$0xff]
    %v130 = vld [vmem:[#allocation9 + $0x1d8] sm:$0xff]
    %v131 = vld [vmem:[#allocation9 + $0x1e0] sm:$0xff]
    %v132 = vld [vmem:[#allocation9 + $0x1e8] sm:$0xff]
    %v133 = vld [vmem:[#allocation9 + $0x1f0] sm:$0xff]
    %v134 = vld [vmem:[#allocation9 + $0x1f8] sm:$0xff]
    %135 = vmatprep.subr.mxu0 %v72
    %136 = vmatpush1.msra.mxu0 %v71
    %137 = vmatprep.subr.mxu0 %v74
    %138 = vmatpush1.msra.mxu0 %v73
    %139 = vmatprep.subr.mxu0 %v76
    %140 = vmatpush1.msra.mxu0 %v75
    %141 = vmatprep.subr.mxu0 %v78
    %142 = vmatpush1.msra.mxu0 %v77
    %143 = vmatprep.subr.mxu0 %v80
    %144 = vmatpush1.msra.mxu0 %v79
    %145 = vmatprep.subr.mxu0 %v82
    %146 = vmatpush1.msra.mxu0 %v81
    %147 = vmatprep.subr.mxu0 %v84
    %148 = vmatpush1.msra.mxu0 %v83
    %149 = vmatprep.subr.mxu0 %v86
    %150 = vmatpush1.msra.mxu0 %v85
    %151 = vmatprep.subr.mxu0 %v88
    %152 = vmatpush1.msra.mxu0 %v87
    %153 = vmatprep.subr.mxu0 %v90
    %154 = vmatpush1.msra.mxu0 %v89
    %155 = vmatprep.subr.mxu0 %v92
    %156 = vmatpush1.msra.mxu0 %v91
    %157 = vmatprep.subr.mxu0 %v94
    %158 = vmatpush1.msra.mxu0 %v93
    %159 = vmatprep.subr.mxu0 %v96
    %160 = vmatpush1.msra.mxu0 %v95
    %161 = vmatprep.subr.mxu0 %v98
    %162 = vmatpush1.msra.mxu0 %v97
    %163 = vmatprep.subr.mxu0 %v100
    %164 = vmatpush1.msra.mxu0 %v99
    %165 = vmatprep.subr.mxu0 %v102
    %166 = vmatpush1.msra.mxu0 %v101
    %167 = vmatprep.subr.mxu0 %v104
    %168 = vmatpush1.msra.mxu0 %v103
    %169 = vmatprep.subr.mxu0 %v106
    %170 = vmatpush1.msra.mxu0 %v105
    %171 = vmatprep.subr.mxu0 %v108
    %172 = vmatpush1.msra.mxu0 %v107
    %173 = vmatprep.subr.mxu0 %v110
    %174 = vmatpush1.msra.mxu0 %v109
    %175 = vmatprep.subr.mxu0 %v112
    %176 = vmatpush1.msra.mxu0 %v111
    %177 = vmatprep.subr.mxu0 %v114
    %178 = vmatpush1.msra.mxu0 %v113
    %179 = vmatprep.subr.mxu0 %v116
    %180 = vmatpush1.msra.mxu0 %v115
    %181 = vmatprep.subr.mxu0 %v118
    %182 = vmatpush1.msra.mxu0 %v117
    %183 = vmatprep.subr.mxu0 %v120
    %184 = vmatpush1.msra.mxu0 %v119
    %185 = vmatprep.subr.mxu0 %v122
    %186 = vmatpush1.msra.mxu0 %v121
    %187 = vmatprep.subr.mxu0 %v124
    %188 = vmatpush1.msra.mxu0 %v123
    %189 = vmatprep.subr.mxu0 %v126
    %190 = vmatpush1.msra.mxu0 %v125
    %191 = vmatprep.subr.mxu0 %v128
    %192 = vmatpush1.msra.mxu0 %v127
    %193 = vmatprep.subr.mxu0 %v130
    %194 = vmatpush1.msra.mxu0 %v129
    %195 = vmatprep.subr.mxu0 %v132
    %196 = vmatpush1.msra.mxu0 %v131
    %197 = vmatprep.subr.mxu0 %v134
    %198 = vmatpush1.msra.mxu0 %v133
    %199 = vmatprep.mubr.f32.mxu0 %v70
    %200 = vmatmul.mubr.f32.gmra.mrb[0].mxu0 %v69
    %v201 = vpop.f32.mrb[0].mxu0
    %v202 = vadd.f32 0.0, %v201
    %v203 = vpop.f32.mrb[0].mxu0
    %v204 = vadd.f32 0.0, %v203
    %205 = vdwg.mxu0
    %206 = vst [vmem:[#allocation10] sm:$0xff] %v202
    %207 = vst [vmem:[#allocation10 + $0x8] sm:$0xff] %v204
    // Predicated region
    $region26: #{tpu_custom_call.1} parent=1 // pred_check
      _
    $region27: #{tpu_custom_call.1} parent=1 // pred_check_branch
      %209 = sbr.rel (0) target = $region29
    $region28: #{tpu_custom_call.1} parent=1 // pred_region
      %s211 = ssub.s32 256, 256
      %212 = vsyncadd [#allocation6], %s211
      %s214 = sshll.u32 [#allocation10], 4
      %s215 = int_to_ptr.vmem [resolvable:$true] %s214
      %217 = dma.vmem_to_hbm [thread:$0]  %s215, 256, %s4, [#allocation6]
    $region29: #{tpu_custom_call.1} parent=1 // pred_fallthru
      _
    // Predicated region
    $region30: #{tpu_custom_call.1} parent=1 // pred_check
      _
    $region31: #{tpu_custom_call.1} parent=1 // pred_check_branch
      %219 = sbr.rel (0) target = $region33
    $region32: #{tpu_custom_call.1} parent=1 // pred_region
      %220 = dma.done [#allocation6], 256
    $region33: #{tpu_custom_call.1} parent=1 // pred_fallthru
      _
    %221 = vsyncpa [#allocation5], 1
    %222 = vsyncpa [#allocation8], 1
    %223 = vsyncpa [#allocation6], 1

</llo_original>
